<compile_context>
chip_gen: v7x
topology: tpu7x:2x2x1
jax: 0.10.0
libtpu: 0.0.40
codegen_flags: <defaults>
</compile_context>

<pallas_src>
import functools

import jax
import jax.numpy as jnp
from jax.experimental import pallas as pl
from jax.experimental.pallas import tpu as pltpu


def _leaky_relu(x, slope=0.01):
    # max(x, 0.01*x): 2 VPU ops instead of compare+select.
    return jnp.maximum(x, slope * x)


def _sigmoid(x):
    # sigmoid(x) = 0.5*(tanh(x/2)+1): tanh runs on the EUP (its own bundle slot),
    # avoiding the VALU reciprocal/divide sequence of 1/(1+exp(-x)).
    return 0.5 * (jnp.tanh(0.5 * x) + 1.0)


def policy_kernel(x_ref, w_ref, b_ref, out_ref, *, num_inputs, hidden, num_out):
    H = hidden
    # --- static row layout of the packed weight slab ---
    r1 = num_inputs                  # W1 rows: [0, r1)
    r2 = r1 + H                      # W2 rows: [r1, r2)
    r3 = r2 + H                      # W3 rows: [r2, r3)
    r4 = r3 + (2 * H + num_out)      # W4 rows: [r3, r4)
    c1, c2, c3, c4 = H, H, 2 * H + num_out, 2 * num_out

    # Static Ref slices: zero-cost views, only the needed window is loaded.
    w1 = w_ref[0:r1, 0:c1]
    w2 = w_ref[r1:r2, 0:c2]
    w3 = w_ref[r2:r3, 0:c3]
    w4 = w_ref[r3:r4, 0:c4]
    b1 = b_ref[0:1, 0:c1]
    b2 = b_ref[1:2, 0:c2]
    b3 = b_ref[2:3, 0:c3]
    b4 = b_ref[3:4, 0:c4]

    x = x_ref[...]
    bf16 = jnp.bfloat16

    # trunk (bf16 MXU operands, f32 accumulate + f32 VPU math)
    h = _leaky_relu(jnp.dot(x.astype(bf16), w1, preferred_element_type=jnp.float32) + b1)
    h = _leaky_relu(jnp.dot(h.astype(bf16), w2, preferred_element_type=jnp.float32) + b2)

    # fused stage-3: columns = [epochs(H) | impact(H) | noise(num_out)]
    s3 = _leaky_relu(jnp.dot(h.astype(bf16), w3, preferred_element_type=jnp.float32) + b3)
    n3 = s3[:, 2 * H:2 * H + num_out]

    # fused stage-4: W4 has zero rows over the noise slice so it consumes the
    # full s3 tile. columns = [epochs(num_out) | impact(num_out)]
    s4 = _leaky_relu(jnp.dot(s3.astype(bf16), w4, preferred_element_type=jnp.float32) + b4)

    # lane-packed output slab (B, 3*num_out) = [epochs | impact | noise]:
    # one EUP pass, one unmasked store.
    out_ref[...] = _sigmoid(jnp.concatenate([s4, n3], axis=1))


def init_policy_params(key, num_inputs, num_outputs, hidden_size, init_w=0.1):
    assert num_outputs % 3 == 0, "num_outputs must be a multiple of 3"
    num_out = num_outputs // 3

    keys = jax.random.split(key, 14)

    def torch_default(kw, kb, fan_in, fan_out):
        # torch nn.Linear default init: U(-1/sqrt(fan_in), 1/sqrt(fan_in))
        bound = 1.0 / jnp.sqrt(float(fan_in))
        w = jax.random.uniform(kw, (fan_in, fan_out), jnp.float32, -bound, bound)
        b = jax.random.uniform(kb, (1, fan_out), jnp.float32, -bound, bound)
        return w, b

    def uniform_initw(kw, kb, fan_in, fan_out):
        w = jax.random.uniform(kw, (fan_in, fan_out), jnp.float32, -init_w, init_w)
        b = jax.random.uniform(kb, (1, fan_out), jnp.float32, -init_w, init_w)
        return w, b

    w1, b1 = torch_default(keys[0], keys[1], num_inputs, hidden_size)
    w2, b2 = torch_default(keys[2], keys[3], hidden_size, hidden_size)
    w3e, b3e = torch_default(keys[4], keys[5], hidden_size, hidden_size)
    w4e, b4e = uniform_initw(keys[6], keys[7], hidden_size, num_out)
    w3i, b3i = torch_default(keys[8], keys[9], hidden_size, hidden_size)
    w4i, b4i = uniform_initw(keys[10], keys[11], hidden_size, num_out)
    w3n, b3n = uniform_initw(keys[12], keys[13], hidden_size, num_out)

    return dict(
        w1=w1, b1=b1, w2=w2, b2=b2,
        w3e=w3e, b3e=b3e, w4e=w4e, b4e=b4e,
        w3i=w3i, b3i=b3i, w4i=w4i, b4i=b4i,
        w3n=w3n, b3n=b3n,
    )


def pack_policy_params(params):
    """Pack the 13 weight/bias tensors into one bf16 weight slab and one f32 bias slab.

    Done once outside the per-call path so the kernel sees only 3 operands.
    """
    w1, w2 = params["w1"], params["w2"]
    w3e, w3i, w3n = params["w3e"], params["w3i"], params["w3n"]
    w4e, w4i = params["w4e"], params["w4i"]
    H = w2.shape[0]
    num_out = w4e.shape[1]

    # stage-3 fused weight: [w3e | w3i | w3n]  -> (H, 2H + num_out)
    w3 = jnp.concatenate([w3e, w3i, w3n], axis=1)
    # stage-4 fused weight consumes the FULL s3 (2H + num_out rows); the rows
    # corresponding to the noise columns are zero:
    #   [[w4e, 0  ],
    #    [0,   w4i],
    #    [0,   0  ]]       -> (2H + num_out, 2*num_out)
    zHn = jnp.zeros((H, num_out), jnp.float32)
    znn = jnp.zeros((num_out, 2 * num_out), jnp.float32)
    w4 = jnp.concatenate(
        [jnp.concatenate([w4e, zHn], axis=1),
         jnp.concatenate([zHn, w4i], axis=1),
         znn], axis=0)

    wmax = max(w1.shape[1], w2.shape[1], w3.shape[1], w4.shape[1])
    pad = lambda a: jnp.pad(a, ((0, 0), (0, wmax - a.shape[1])))
    w_slab = jnp.concatenate([pad(w1), pad(w2), pad(w3), pad(w4)], axis=0)
    w_slab = w_slab.astype(jnp.bfloat16)   # MXU-native; halves the weight DMA

    b3 = jnp.concatenate([params["b3e"], params["b3i"], params["b3n"]], axis=1)
    b4 = jnp.concatenate([params["b4e"], params["b4i"]], axis=1)
    # one bias row per fused layer, column-padded: avoids lane-128 boundary crossings
    b_slab = jnp.concatenate(
        [pad(params["b1"]), pad(params["b2"]), pad(b3), pad(b4)], axis=0)
    return w_slab, b_slab


def policy_forward(state, w_slab, b_slab, *, num_inputs, hidden, num_out):
    """state: (B, num_inputs). Returns (3*B, num_out) == cat([epochs, impact, noise], dim=0)."""
    B = state.shape[0]
    H = hidden

    # Batch tiling: single grid point for small B; batch grid axis (parallel,
    # slabs VMEM-resident via constant index_maps) for large B.
    TB = B if B <= 256 else 256
    grid = (pl.cdiv(B, TB),)

    kernel = functools.partial(
        policy_kernel, num_inputs=num_inputs, hidden=hidden, num_out=num_out)

    flops = 2 * B * (num_inputs * H + H * H + H * (2 * H + num_out)
                     + (2 * H + num_out) * (2 * num_out))
    cost = pl.CostEstimate(
        flops=flops,
        transcendentals=B * 3 * num_out,
        bytes_accessed=int(state.size * 4 + w_slab.size * 2 + b_slab.size * 4
                           + B * 3 * num_out * 4),
    )

    out2d = pl.pallas_call(
        kernel,
        out_shape=jax.ShapeDtypeStruct((B, 3 * num_out), jnp.float32),
        grid=grid,
        in_specs=[
            pl.BlockSpec((TB, num_inputs), lambda i: (i, 0)),
            pl.BlockSpec(w_slab.shape, lambda i: (0, 0)),   # VMEM-resident across batch tiles
            pl.BlockSpec(b_slab.shape, lambda i: (0, 0)),
        ],
        out_specs=pl.BlockSpec((TB, 3 * num_out), lambda i: (i, 0)),
        compiler_params=pltpu.CompilerParams(dimension_semantics=("parallel",)),
        cost_estimate=cost,
    )(state, w_slab, b_slab)

    # Free layout plumbing: lane-packed (B, 3*num_out) -> torch cat(dim=0) (3B, num_out).
    return jnp.transpose(out2d.reshape(B, 3, num_out), (1, 0, 2)).reshape(3 * B, num_out)


def policy_forward_ref(state, params):
    """Pure-JAX f32 reference (unfused, matches the torch module op-for-op)."""
    lrelu = lambda x: jnp.where(x > 0, x, 0.01 * x)
    sig = lambda x: 1.0 / (1.0 + jnp.exp(-x))
    h = lrelu(state @ params["w1"] + params["b1"])
    h = lrelu(h @ params["w2"] + params["b2"])
    e = lrelu(h @ params["w3e"] + params["b3e"])
    e = sig(lrelu(e @ params["w4e"] + params["b4e"]))
    i = lrelu(h @ params["w3i"] + params["b3i"])
    i = sig(lrelu(i @ params["w4i"] + params["b4i"]))
    n = sig(lrelu(h @ params["w3n"] + params["b3n"]))
    return jnp.concatenate([e, i, n], axis=0)


if __name__ == "__main__":
    # PolicyNetwork(num_inputs=16, num_outputs=24, hidden_size=32) -> per-branch out = 8
    batch = 2
    num_inputs = 16
    num_outputs_total = 24  # multiple of 3 -> 8 per branch
    hidden_size = 32

    key = jax.random.PRNGKey(0)
    kp, kx = jax.random.split(key)
    params = init_policy_params(kp, num_inputs, num_outputs_total, hidden_size)
    state = jax.random.normal(kx, (batch, num_inputs), dtype=jnp.float32)

    # Pack params once (outside the per-call path).
    w_slab, b_slab = pack_policy_params(params)

    out = policy_forward(
        state, w_slab, b_slab,
        num_inputs=num_inputs, hidden=hidden_size, num_out=num_outputs_total // 3,
    )
    out = jax.block_until_ready(out)

    ref = policy_forward_ref(state, params)
    assert out.shape == (3 * batch, num_outputs_total // 3), out.shape
    # bf16 MXU operands vs f32 reference: loosened tolerance (post-sigmoid error << 1e-2).
    assert jnp.allclose(out, ref, atol=2e-2, rtol=2e-2), "mismatch vs reference"

    print("KERNEL_OK")
</pallas_src>

<mosaic_0001>
module attributes {stable_mosaic.version = 11 : i64} {
  func.func @policy_kernel(%arg0: i32, %arg1: memref<2x16xf32, #tpu.memory_space<vmem>>, %arg2: memref<152x72xbf16, #tpu.memory_space<vmem>>, %arg3: memref<4x72xf32, #tpu.memory_space<vmem>>, %arg4: memref<2x24xf32, #tpu.memory_space<vmem>>) attributes {dimension_semantics = [#tpu.dimension_semantics<parallel>], iteration_bounds = array<i64: 1>, scalar_prefetch = 0 : i64, scratch_operands = 0 : i64, tpu.core_type = #tpu.core_type<tc>, window_params = [{transform_indices = @transform_0, window_bounds = array<i64: 2, 16>}, {pipeline_mode = #tpu.pipeline_mode<synchronous>, transform_indices = @transform_1, window_bounds = array<i64: 152, 72>}, {pipeline_mode = #tpu.pipeline_mode<synchronous>, transform_indices = @transform_2, window_bounds = array<i64: 4, 72>}, {transform_indices = @transform_3, window_bounds = array<i64: 2, 24>}]} {
    %c0 = arith.constant 0 : index
    %c0_0 = arith.constant 0 : index
    %0 = vector.load %arg2[%c0, %c0_0] : memref<152x72xbf16, #tpu.memory_space<vmem>>, vector<16x32xbf16>
    %c16 = arith.constant 16 : index
    %c0_1 = arith.constant 0 : index
    %1 = vector.load %arg2[%c16, %c0_1] : memref<152x72xbf16, #tpu.memory_space<vmem>>, vector<32x32xbf16>
    %c48 = arith.constant 48 : index
    %c0_2 = arith.constant 0 : index
    %2 = vector.load %arg2[%c48, %c0_2] : memref<152x72xbf16, #tpu.memory_space<vmem>>, vector<32x72xbf16>
    %c80 = arith.constant 80 : index
    %c0_3 = arith.constant 0 : index
    %3 = vector.load %arg2[%c80, %c0_3] : memref<152x72xbf16, #tpu.memory_space<vmem>>, vector<72x16xbf16>
    %c0_4 = arith.constant 0 : index
    %c0_5 = arith.constant 0 : index
    %4 = vector.load %arg3[%c0_4, %c0_5] : memref<4x72xf32, #tpu.memory_space<vmem>>, vector<1x32xf32>
    %c1 = arith.constant 1 : index
    %c0_6 = arith.constant 0 : index
    %5 = vector.load %arg3[%c1, %c0_6] : memref<4x72xf32, #tpu.memory_space<vmem>>, vector<1x32xf32>
    %c2 = arith.constant 2 : index
    %c0_7 = arith.constant 0 : index
    %6 = vector.load %arg3[%c2, %c0_7] : memref<4x72xf32, #tpu.memory_space<vmem>>, vector<1x72xf32>
    %c3 = arith.constant 3 : index
    %c0_8 = arith.constant 0 : index
    %7 = vector.load %arg3[%c3, %c0_8] : memref<4x72xf32, #tpu.memory_space<vmem>>, vector<1x16xf32>
    %c0_9 = arith.constant 0 : index
    %c0_10 = arith.constant 0 : index
    %8 = vector.load %arg1[%c0_9, %c0_10] : memref<2x16xf32, #tpu.memory_space<vmem>>, vector<2x16xf32>
    %9 = arith.truncf %8 : vector<2x16xf32> to vector<2x16xbf16>
    %cst = arith.constant dense<0.000000e+00> : vector<2x32xf32>
    %10 = tpu.matmul %9, %0, %cst {dimension_numbers = #tpu.dot_dimension_numbers<[1], [0], [0], [1], [0, 0, 1, 1], [], []>} : vector<2x16xbf16>, vector<16x32xbf16>, vector<2x32xf32> -> vector<2x32xf32>
    %11 = vector.broadcast %4 : vector<1x32xf32> to vector<2x32xf32>
    %12 = arith.addf %10, %11 : vector<2x32xf32>
    %cst_11 = arith.constant 0.00999999977 : f32
    %13 = vector.broadcast %cst_11 : f32 to vector<2x32xf32>
    %14 = arith.mulf %13, %12 : vector<2x32xf32>
    %15 = arith.maximumf %12, %14 : vector<2x32xf32>
    %16 = arith.truncf %15 : vector<2x32xf32> to vector<2x32xbf16>
    %cst_12 = arith.constant dense<0.000000e+00> : vector<2x32xf32>
    %17 = tpu.matmul %16, %1, %cst_12 {dimension_numbers = #tpu.dot_dimension_numbers<[1], [0], [0], [1], [0, 0, 1, 1], [], []>} : vector<2x32xbf16>, vector<32x32xbf16>, vector<2x32xf32> -> vector<2x32xf32>
    %18 = vector.broadcast %5 : vector<1x32xf32> to vector<2x32xf32>
    %19 = arith.addf %17, %18 : vector<2x32xf32>
    %cst_13 = arith.constant 0.00999999977 : f32
    %20 = vector.broadcast %cst_13 : f32 to vector<2x32xf32>
    %21 = arith.mulf %20, %19 : vector<2x32xf32>
    %22 = arith.maximumf %19, %21 : vector<2x32xf32>
    %23 = arith.truncf %22 : vector<2x32xf32> to vector<2x32xbf16>
    %cst_14 = arith.constant dense<0.000000e+00> : vector<2x72xf32>
    %24 = tpu.matmul %23, %2, %cst_14 {dimension_numbers = #tpu.dot_dimension_numbers<[1], [0], [0], [1], [0, 0, 1, 1], [], []>} : vector<2x32xbf16>, vector<32x72xbf16>, vector<2x72xf32> -> vector<2x72xf32>
    %25 = vector.broadcast %6 : vector<1x72xf32> to vector<2x72xf32>
    %26 = arith.addf %24, %25 : vector<2x72xf32>
    %cst_15 = arith.constant 0.00999999977 : f32
    %27 = vector.broadcast %cst_15 : f32 to vector<2x72xf32>
    %28 = arith.mulf %27, %26 : vector<2x72xf32>
    %29 = arith.maximumf %26, %28 : vector<2x72xf32>
    %30 = vector.extract_strided_slice %29 {offsets = [0, 64], sizes = [2, 8], strides = [1, 1]} : vector<2x72xf32> to vector<2x8xf32>
    %31 = arith.truncf %29 : vector<2x72xf32> to vector<2x72xbf16>
    %cst_16 = arith.constant dense<0.000000e+00> : vector<2x16xf32>
    %32 = tpu.matmul %31, %3, %cst_16 {dimension_numbers = #tpu.dot_dimension_numbers<[1], [0], [0], [1], [0, 0, 1, 1], [], []>} : vector<2x72xbf16>, vector<72x16xbf16>, vector<2x16xf32> -> vector<2x16xf32>
    %33 = vector.broadcast %7 : vector<1x16xf32> to vector<2x16xf32>
    %34 = arith.addf %32, %33 : vector<2x16xf32>
    %cst_17 = arith.constant 0.00999999977 : f32
    %35 = vector.broadcast %cst_17 : f32 to vector<2x16xf32>
    %36 = arith.mulf %35, %34 : vector<2x16xf32>
    %37 = arith.maximumf %34, %36 : vector<2x16xf32>
    %38 = tpu.concatenate %37, %30 in 1 : vector<2x16xf32>, vector<2x8xf32> -> vector<2x24xf32>
    %cst_18 = arith.constant 5.000000e-01 : f32
    %39 = vector.broadcast %cst_18 : f32 to vector<2x24xf32>
    %40 = arith.mulf %39, %38 : vector<2x24xf32>
    %41 = math.tanh %40 : vector<2x24xf32>
    %cst_19 = arith.constant 1.000000e+00 : f32
    %42 = vector.broadcast %cst_19 : f32 to vector<2x24xf32>
    %43 = arith.addf %41, %42 : vector<2x24xf32>
    %cst_20 = arith.constant 5.000000e-01 : f32
    %44 = vector.broadcast %cst_20 : f32 to vector<2x24xf32>
    %45 = arith.mulf %44, %43 : vector<2x24xf32>
    %c0_21 = arith.constant 0 : index
    %c0_22 = arith.constant 0 : index
    %46 = vector.load %arg4[%c0_21, %c0_22] : memref<2x24xf32, #tpu.memory_space<vmem>>, vector<2x24xf32>
    tpu.vector_store %arg4[%c0_21, %c0_22], %45 {strides = array<i32>} : memref<2x24xf32, #tpu.memory_space<vmem>>, vector<2x24xf32>,
    return
  }
  func.func @transform_0(%arg0: i32) -> (i32, i32) {
    %c0_i32 = arith.constant 0 : i32
    %c0_i32_0 = arith.constant 0 : i32
    return %arg0, %c0_i32 : i32, i32
  }
  func.func @transform_1(%arg0: i32) -> (i32, i32) {
    %c0_i32 = arith.constant 0 : i32
    %c0_i32_0 = arith.constant 0 : i32
    %c0_i32_1 = arith.constant 0 : i32
    return %c0_i32, %c0_i32_0 : i32, i32
  }
  func.func @transform_2(%arg0: i32) -> (i32, i32) {
    %c0_i32 = arith.constant 0 : i32
    %c0_i32_0 = arith.constant 0 : i32
    %c0_i32_1 = arith.constant 0 : i32
    return %c0_i32, %c0_i32_0 : i32, i32
  }
  func.func @transform_3(%arg0: i32) -> (i32, i32) {
    %c0_i32 = arith.constant 0 : i32
    %c0_i32_0 = arith.constant 0 : i32
    return %arg0, %c0_i32 : i32, i32
  }
}

</mosaic_0001>

<llo_original>
// kernel: tpu_custom_call.1
$region0: #{tpu_custom_call.1}
  #allocation0 [shape = 'u32[]', space=smem, size = 0x4, offset = 0x4, fixed_abs, tag = 'smem constant byte address 0x4 - core index']
  #allocation1 [shape = 'u32[144,128]{1,0:T(1,128)}', space=vmem, size = 0x12000, scoped, tag = 'internal scratch']
  %s0 = inlined_call_operand.vmem [shape: f32[2,16], index: 0, kind: input, shape index: {}]
  %s1 = inlined_call_operand.vmem [shape: bf16[152,72], index: 1, kind: input, shape index: {}]
  %s2 = inlined_call_operand.vmem [shape: f32[4,72], index: 2, kind: input, shape index: {}]
  %s3 = inlined_call_operand.hbm [shape: f32[2,24], index: 3, kind: output, shape index: {}]
  %s4 = sld [smem:[#allocation0]]
  $region22: #{tpu_custom_call.1} parent=0
    _
  %s6 = ssub.s32 1, %s4
  %s7 = scalar_select 0, %s6, %s4
  $region1: #{tpu_custom_call.1} parent=0
    #allocation2 [shape = 'u8[1024]{0}', space=vmem, size = 0x400, scoped, tag = 'output window, operand 0, single buffered']
    #allocation3 [shape = 's32[1]{0}', space=sflag, size = 0x4, scoped, tag = 'scoped memory for tpu_custom_call.1']
    %8 = vsyncpa [#allocation3], 0
    // Predicated region
    $region2: #{tpu_custom_call.1} parent=1 // pred_check
      _
    $region3: #{tpu_custom_call.1} parent=1 // pred_check_branch
      %10 = sbr.rel (0) target = $region5
    $region4: #{tpu_custom_call.1} parent=1 // pred_region
      _
    $region5: #{tpu_custom_call.1} parent=1 // pred_fallthru
      _
    // Predicated region
    $region6: #{tpu_custom_call.1} parent=1 // pred_check
      _
    $region7: #{tpu_custom_call.1} parent=1 // pred_check_branch
      %12 = sbr.rel (0) target = $region9
    $region8: #{tpu_custom_call.1} parent=1 // pred_region
      _
    $region9: #{tpu_custom_call.1} parent=1 // pred_fallthru
      _
    // Predicated region
    $region10: #{tpu_custom_call.1} parent=1 // pred_check
      _
    $region11: #{tpu_custom_call.1} parent=1 // pred_check_branch
      %14 = sbr.rel (0) target = $region13
    $region12: #{tpu_custom_call.1} parent=1 // pred_region
      _
    $region13: #{tpu_custom_call.1} parent=1 // pred_fallthru
      _
    %v16 = vld [vmem:[%s1] sm:$0xf]
    %v17 = vld [vmem:[%s1 + $0x4] sm:$0xf]
    %v18 = vld [vmem:[%s1 + $0x8] sm:$0xf]
    %v19 = vld [vmem:[%s1 + $0xc] sm:$0xf]
    %v20 = vld [vmem:[%s1 + $0x10] sm:$0xf]
    %v21 = vld [vmem:[%s1 + $0x14] sm:$0xf]
    %v22 = vld [vmem:[%s1 + $0x18] sm:$0xf]
    %v23 = vld [vmem:[%s1 + $0x1c] sm:$0xf]
    %v24 = vld [vmem:[%s1 + $0x20] sm:$0xf]
    %v25 = vld [vmem:[%s1 + $0x24] sm:$0xf]
    %v26 = vld [vmem:[%s1 + $0x28] sm:$0xf]
    %v27 = vld [vmem:[%s1 + $0x2c] sm:$0xf]
    %v28 = vld [vmem:[%s1 + $0x30] sm:$0xf]
    %v29 = vld [vmem:[%s1 + $0x34] sm:$0xf]
    %v30 = vld [vmem:[%s1 + $0x38] sm:$0xf]
    %v31 = vld [vmem:[%s1 + $0x3c] sm:$0xf]
    %v32 = vld [vmem:[%s1 + $0x40] sm:$0xf]
    %v33 = vld [vmem:[%s1 + $0x44] sm:$0xf]
    %v34 = vld [vmem:[%s1 + $0x48] sm:$0xf]
    %v35 = vld [vmem:[%s2] sm:$0x1]
    %v36 = vld [vmem:[%s2 + $0x1] sm:$0x1]
    %v37 = vld [vmem:[%s2 + $0x2] sm:$0x1]
    %v38 = vld [vmem:[%s2 + $0x3] sm:$0x1]
    %v39 = vld [vmem:[%s0] sm:$0x3]
    %v40 = vpack.c.bf16 %v39, %v39
    %v41 = vlaneseq
    %v42 = vshrl.u32 %v41, 7
    %v43 = vsub.s32 0, %v42
    %v44 = vrot.slane %v35, %v43
    %v47 = vunpack.c.l.b16 %v16
    %v48 = vunpack.c.l.b16 %v17
    %v49 = vpack.c.b16 %v48, %v47
    %vm51 = vcmask 130048
    %v53 = vsel %vm51, %v40, 0
    %55 = vmatprep.subr.bf16.mxu0 0
    %56 = vmatpush1.bf16.msra.mxu0 %v49
    %57 = vmatprep.subr.bf16.mxu0 0
    %58 = vmatpush1.bf16.msra.mxu0 0
    %59 = vmatprep.subr.bf16.mxu0 0
    %60 = vmatpush1.bf16.msra.mxu0 0
    %61 = vmatprep.subr.bf16.mxu0 0
    %62 = vmatpush1.bf16.msra.mxu0 0
    %63 = vmatprep.subr.bf16.mxu0 0
    %64 = vmatpush1.bf16.msra.mxu0 0
    %65 = vmatprep.subr.bf16.mxu0 0
    %66 = vmatpush1.bf16.msra.mxu0 0
    %67 = vmatprep.subr.bf16.mxu0 0
    %68 = vmatpush1.bf16.msra.mxu0 0
    %69 = vmatprep.subr.bf16.mxu0 0
    %70 = vmatpush1.bf16.msra.mxu0 0
    %71 = vmatprep.subr.bf16.mxu0 0
    %72 = vmatpush1.bf16.msra.mxu0 0
    %73 = vmatprep.subr.bf16.mxu0 0
    %74 = vmatpush1.bf16.msra.mxu0 0
    %75 = vmatprep.subr.bf16.mxu0 0
    %76 = vmatpush1.bf16.msra.mxu0 0
    %77 = vmatprep.subr.bf16.mxu0 0
    %78 = vmatpush1.bf16.msra.mxu0 0
    %79 = vmatprep.subr.bf16.mxu0 0
    %80 = vmatpush1.bf16.msra.mxu0 0
    %81 = vmatprep.subr.bf16.mxu0 0
    %82 = vmatpush1.bf16.msra.mxu0 0
    %83 = vmatprep.subr.bf16.mxu0 0
    %84 = vmatpush1.bf16.msra.mxu0 0
    %85 = vmatprep.subr.bf16.mxu0 0
    %86 = vmatpush1.bf16.msra.mxu0 0
    %87 = vmatprep.mubr.bf16.mxu0 0
    %88 = vmatmul.mubr.bf16.gmra.mrb[0].mxu0 %v53
    %v89 = vpop.f32.mrb[0].mxu0
    %v90 = vadd.f32 %v44, %v89
    %v91 = vpop.f32.mrb[0].mxu0
    %v92 = vpop.f32.mrb[0].mxu0
    %v93 = vpop.f32.mrb[0].mxu0
    %94 = vdwg.mxu0
    %v95 = vmul.f32 %v90, 0.01
    %v96 = vmax.f32 %v90, %v95
    %v97 = vpack.c.bf16 %v96, %v96
    %v98 = vlaneseq
    %v99 = vshrl.u32 %v98, 7
    %v100 = vsub.s32 0, %v99
    %v101 = vrot.slane %v36, %v100
    %v106 = vunpack.c.l.b16 %v18
    %v107 = vunpack.c.l.b16 %v19
    %v108 = vunpack.c.l.b16 %v20
    %v109 = vunpack.c.l.b16 %v21
    %v110 = vpack.c.b16 %v107, %v106
    %v111 = vpack.c.b16 %v109, %v108
    %vm114 = vcmask 261120
    %v116 = vsel %vm114, %v97, 0
    %118 = vmatprep.subr.bf16.mxu0 0
    %119 = vmatpush1.bf16.msra.mxu0 %v110
    %120 = vmatprep.subr.bf16.mxu0 0
    %121 = vmatpush1.bf16.msra.mxu0 %v111
    %122 = vmatprep.subr.bf16.mxu0 0
    %123 = vmatpush1.bf16.msra.mxu0 0
    %124 = vmatprep.subr.bf16.mxu0 0
    %125 = vmatpush1.bf16.msra.mxu0 0
    %126 = vmatprep.subr.bf16.mxu0 0
    %127 = vmatpush1.bf16.msra.mxu0 0
    %128 = vmatprep.subr.bf16.mxu0 0
    %129 = vmatpush1.bf16.msra.mxu0 0
    %130 = vmatprep.subr.bf16.mxu0 0
    %131 = vmatpush1.bf16.msra.mxu0 0
    %132 = vmatprep.subr.bf16.mxu0 0
    %133 = vmatpush1.bf16.msra.mxu0 0
    %134 = vmatprep.subr.bf16.mxu0 0
    %135 = vmatpush1.bf16.msra.mxu0 0
    %136 = vmatprep.subr.bf16.mxu0 0
    %137 = vmatpush1.bf16.msra.mxu0 0
    %138 = vmatprep.subr.bf16.mxu0 0
    %139 = vmatpush1.bf16.msra.mxu0 0
    %140 = vmatprep.subr.bf16.mxu0 0
    %141 = vmatpush1.bf16.msra.mxu0 0
    %142 = vmatprep.subr.bf16.mxu0 0
    %143 = vmatpush1.bf16.msra.mxu0 0
    %144 = vmatprep.subr.bf16.mxu0 0
    %145 = vmatpush1.bf16.msra.mxu0 0
    %146 = vmatprep.subr.bf16.mxu0 0
    %147 = vmatpush1.bf16.msra.mxu0 0
    %148 = vmatprep.subr.bf16.mxu0 0
    %149 = vmatpush1.bf16.msra.mxu0 0
    %150 = vmatprep.mubr.bf16.mxu0 0
    %151 = vmatmul.mubr.bf16.gmra.mrb[0].mxu0 %v116
    %v152 = vpop.f32.mrb[0].mxu0
    %v153 = vadd.f32 %v101, %v152
    %v154 = vpop.f32.mrb[0].mxu0
    %v155 = vpop.f32.mrb[0].mxu0
    %v156 = vpop.f32.mrb[0].mxu0
    %157 = vdwg.mxu0
    %v158 = vmul.f32 %v153, 0.01
    %v159 = vmax.f32 %v153, %v158
    %v160 = vpack.c.bf16 %v159, %v159
    %v161 = vlaneseq
    %v162 = vshrl.u32 %v161, 7
    %v163 = vsub.s32 0, %v162
    %v164 = vrot.slane %v37, %v163
    %v169 = vunpack.c.l.b16 %v22
    %v170 = vunpack.c.l.b16 %v23
    %v171 = vunpack.c.l.b16 %v24
    %v172 = vunpack.c.l.b16 %v25
    %v173 = vpack.c.b16 %v170, %v169
    %v174 = vpack.c.b16 %v172, %v171
    %v178 = vsel %vm114, %v160, 0
    %180 = vmatprep.subr.bf16.mxu0 0
    %181 = vmatpush1.bf16.msra.mxu0 %v173
    %182 = vmatprep.subr.bf16.mxu0 0
    %183 = vmatpush1.bf16.msra.mxu0 %v174
    %184 = vmatprep.subr.bf16.mxu0 0
    %185 = vmatpush1.bf16.msra.mxu0 0
    %186 = vmatprep.subr.bf16.mxu0 0
    %187 = vmatpush1.bf16.msra.mxu0 0
    %188 = vmatprep.subr.bf16.mxu0 0
    %189 = vmatpush1.bf16.msra.mxu0 0
    %190 = vmatprep.subr.bf16.mxu0 0
    %191 = vmatpush1.bf16.msra.mxu0 0
    %192 = vmatprep.subr.bf16.mxu0 0
    %193 = vmatpush1.bf16.msra.mxu0 0
    %194 = vmatprep.subr.bf16.mxu0 0
    %195 = vmatpush1.bf16.msra.mxu0 0
    %196 = vmatprep.subr.bf16.mxu0 0
    %197 = vmatpush1.bf16.msra.mxu0 0
    %198 = vmatprep.subr.bf16.mxu0 0
    %199 = vmatpush1.bf16.msra.mxu0 0
    %200 = vmatprep.subr.bf16.mxu0 0
    %201 = vmatpush1.bf16.msra.mxu0 0
    %202 = vmatprep.subr.bf16.mxu0 0
    %203 = vmatpush1.bf16.msra.mxu0 0
    %204 = vmatprep.subr.bf16.mxu0 0
    %205 = vmatpush1.bf16.msra.mxu0 0
    %206 = vmatprep.subr.bf16.mxu0 0
    %207 = vmatpush1.bf16.msra.mxu0 0
    %208 = vmatprep.subr.bf16.mxu0 0
    %209 = vmatpush1.bf16.msra.mxu0 0
    %210 = vmatprep.subr.bf16.mxu0 0
    %211 = vmatpush1.bf16.msra.mxu0 0
    %212 = vmatprep.mubr.bf16.mxu0 0
    %213 = vmatmul.mubr.bf16.gmra.mrb[0].mxu0 %v178
    %v214 = vpop.f32.mrb[0].mxu0
    %v215 = vadd.f32 %v164, %v214
    %v216 = vpop.f32.mrb[0].mxu0
    %v217 = vpop.f32.mrb[0].mxu0
    %v218 = vpop.f32.mrb[0].mxu0
    %219 = vdwg.mxu0
    %v220 = vmul.f32 %v215, 0.01
    %v221 = vmax.f32 %v215, %v220
    %v222 = vpack.c.bf16 %v221, %v221
    %v223 = vlaneseq
    %v224 = vshrl.u32 %v223, 7
    %v225 = vsub.s32 0, %v224
    %v226 = vrot.slane %v38, %v225
    %v236 = vunpack.c.l.b16 %v26
    %v237 = vunpack.c.l.b16 %v27
    %v238 = vunpack.c.l.b16 %v28
    %v239 = vunpack.c.l.b16 %v29
    %v240 = vunpack.c.l.b16 %v30
    %v241 = vunpack.c.l.b16 %v31
    %v242 = vunpack.c.l.b16 %v32
    %v243 = vunpack.c.l.b16 %v33
    %v244 = vunpack.c.l.b16 %v34
    %v245 = vpack.c.b16 %v237, %v236
    %v246 = vpack.c.b16 %v239, %v238
    %v247 = vpack.c.b16 %v241, %v240
    %v248 = vpack.c.b16 %v243, %v242
    %v249 = vpack.c.b16 %v244, %v244
    %vm254 = vcmask 588800
    %v256 = vsel %vm254, %v222, 0
    %vm258 = vcmask 1043456
    %v260 = vsel %vm258, %v249, 0
    %262 = vmatprep.subr.bf16.mxu0 0
    %263 = vmatpush1.bf16.msra.mxu0 %v245
    %264 = vmatprep.subr.bf16.mxu0 0
    %265 = vmatpush1.bf16.msra.mxu0 %v246
    %266 = vmatprep.subr.bf16.mxu0 0
    %267 = vmatpush1.bf16.msra.mxu0 %v247
    %268 = vmatprep.subr.bf16.mxu0 0
    %269 = vmatpush1.bf16.msra.mxu0 %v248
    %270 = vmatprep.subr.bf16.mxu0 0
    %271 = vmatpush1.bf16.msra.mxu0 %v260
    %272 = vmatprep.subr.bf16.mxu0 0
    %273 = vmatpush1.bf16.msra.mxu0 0
    %274 = vmatprep.subr.bf16.mxu0 0
    %275 = vmatpush1.bf16.msra.mxu0 0
    %276 = vmatprep.subr.bf16.mxu0 0
    %277 = vmatpush1.bf16.msra.mxu0 0
    %278 = vmatprep.subr.bf16.mxu0 0
    %279 = vmatpush1.bf16.msra.mxu0 0
    %280 = vmatprep.subr.bf16.mxu0 0
    %281 = vmatpush1.bf16.msra.mxu0 0
    %282 = vmatprep.subr.bf16.mxu0 0
    %283 = vmatpush1.bf16.msra.mxu0 0
    %284 = vmatprep.subr.bf16.mxu0 0
    %285 = vmatpush1.bf16.msra.mxu0 0
    %286 = vmatprep.subr.bf16.mxu0 0
    %287 = vmatpush1.bf16.msra.mxu0 0
    %288 = vmatprep.subr.bf16.mxu0 0
    %289 = vmatpush1.bf16.msra.mxu0 0
    %290 = vmatprep.subr.bf16.mxu0 0
    %291 = vmatpush1.bf16.msra.mxu0 0
    %292 = vmatprep.subr.bf16.mxu0 0
    %293 = vmatpush1.bf16.msra.mxu0 0
    %294 = vmatprep.mubr.bf16.mxu0 0
    %295 = vmatmul.mubr.bf16.gmra.mrb[0].mxu0 %v256
    %v296 = vpop.f32.mrb[0].mxu0
    %v297 = vadd.f32 %v226, %v296
    %v298 = vpop.f32.mrb[0].mxu0
    %v299 = vpop.f32.mrb[0].mxu0
    %v300 = vpop.f32.mrb[0].mxu0
    %301 = vdwg.mxu0
    %v302 = vmul.f32 %v297, 0.01
    %v303 = vmax.f32 %v297, %v302
    %305 = vrot.lane.b32.xlu0 %v221, 80
    %v306 = vpop.permute.xlu0 %305
    %v308 = vsel %vm51, %v303, %v306
    %v309 = vmul.f32 %v308, 0.5
    %v310 = vtanh.pop %v309
    %v311 = vadd.f32 %v310, 1.0
    %v312 = vmul.f32 %v311, 0.5
    %vm313 = vcmask 189440
    %314 = vst.msk [vmem:[#allocation2] sm:$0x3] %vm313, %v312
    // Predicated region
    $region14: #{tpu_custom_call.1} parent=1 // pred_check
      _
    $region15: #{tpu_custom_call.1} parent=1 // pred_check_branch
      %316 = sbr.rel (0) target = $region17
    $region16: #{tpu_custom_call.1} parent=1 // pred_region
      %s318 = ssub.s32 32, 32
      %319 = vsyncadd [#allocation3], %s318
      %s321 = sshll.u32 [#allocation2], 4
      %s322 = int_to_ptr.vmem [resolvable:$true] %s321
      %324 = dma.vmem_to_hbm [thread:$0]  %s322, 32, %s3, [#allocation3]
    $region17: #{tpu_custom_call.1} parent=1 // pred_fallthru
      _
    // Predicated region
    $region18: #{tpu_custom_call.1} parent=1 // pred_check
      _
    $region19: #{tpu_custom_call.1} parent=1 // pred_check_branch
      %326 = sbr.rel (0) target = $region21
    $region20: #{tpu_custom_call.1} parent=1 // pred_region
      %327 = dma.done [#allocation3], 32
    $region21: #{tpu_custom_call.1} parent=1 // pred_fallthru
      _
    %328 = vsyncpa [#allocation3], 1

</llo_original>
